<compile_context>
chip_gen: v5e
topology: v5e:2x2
jax: 0.10.0
libtpu: 0.0.40
codegen_flags: <defaults>
</compile_context>

<pallas_src>
import jax
import jax.numpy as jnp
from jax.experimental import pallas as pl
from jax.experimental.pallas import tpu as pltpu


def _domain_classifier_kernel(x_ref, w1_ref, p_ref, o_ref):
    # x_ref:  (TB, 100)   batch tile
    # w1_ref: (100, 10)   resident fc1 weight
    # p_ref:  (3, 10)     packed params: row0 = b1, row1 = w2 (row), row2[0] = b2
    # o_ref:  (1, TB)     lane-dense output tile
    x = x_ref[...]
    w1 = w1_ref[...]
    b1 = p_ref[0:1, :]            # (1, 10)
    w2_row = p_ref[1:2, :]        # (1, 10)
    b2 = p_ref[2:3, 0:1]          # (1, 1)

    # fc1 on the MXU (f32 accumulate) + leaky_relu (PyTorch default slope 0.01).
    h = jnp.dot(x, w1,
                preferred_element_type=jnp.float32,
                precision=jax.lax.Precision.HIGHEST) + b1          # (TB, 10)
    h = jnp.maximum(h, 0.01 * h)

    # fc2 computed transposed -> (1, TB) lane-dense result:
    #   y[0, t] = sum_k w2_row[0, k] * h[t, k]
    y = jax.lax.dot_general(
        w2_row, h,
        dimension_numbers=(((1,), (1,)), ((), ())),
        preferred_element_type=jnp.float32,
        precision=jax.lax.Precision.HIGHEST) + b2                  # (1, TB)

    o_ref[...] = jax.nn.sigmoid(y).astype(o_ref.dtype)


def _pick_tile(B, *, tb_max=8192, tb_min=256, min_tiles=4):
    """Pick a sublane-aligned batch tile. Large B: big tiles but >= min_tiles
    grid steps (so v7x megacore has work to shard). Small B: one small tile."""
    b8 = ((max(B, 1) + 7) // 8) * 8
    if b8 <= tb_min:
        return b8
    tb = min(tb_max, b8)
    if pl.cdiv(B, tb) < min_tiles:
        tb = ((pl.cdiv(b8, min_tiles) + 127) // 128) * 128
        tb = min(max(tb, tb_min), tb_max)
    return tb


def domain_classifier_forward(x, w1, b1, w2, b2, *, tb=None):
    """x: (B, 100) float32 -> (B, 1) float32."""
    B, f_in = x.shape
    f_hid = w1.shape[1]

    if tb is None:
        tb = _pick_tile(B)
    tb = max(8, (tb // 8) * 8)          # keep the x tile sublane-aligned
    n_tiles = pl.cdiv(B, tb)            # no whole-array padding; last block clipped

    # Pack the tiny params into a single resident VMEM block.
    params = jnp.zeros((3, f_hid), jnp.float32)
    params = params.at[0, :].set(b1.reshape(-1).astype(jnp.float32))
    params = params.at[1, :].set(w2.reshape(-1).astype(jnp.float32))
    params = params.at[2, 0].set(jnp.asarray(b2, jnp.float32).reshape(-1)[0])

    cost = pl.CostEstimate(
        flops=2 * B * f_in * f_hid + 2 * B * f_hid + 4 * B * f_hid,
        transcendentals=2 * B,                       # sigmoid ~ exp + reciprocal
        bytes_accessed=B * (f_in + 1) * 4 + (f_in * f_hid + 3 * f_hid) * 4,
    )

    out = pl.pallas_call(
        _domain_classifier_kernel,
        out_shape=jax.ShapeDtypeStruct((n_tiles, tb), jnp.float32),
        grid_spec=pltpu.PrefetchScalarGridSpec(
            num_scalar_prefetch=0,
            grid=(n_tiles,),
            in_specs=[
                pl.BlockSpec((tb, f_in), lambda i: (i, 0)),      # x: tiled over batch
                pl.BlockSpec((f_in, f_hid), lambda i: (0, 0)),   # w1: resident
                pl.BlockSpec((3, f_hid), lambda i: (0, 0)),      # packed b1/w2/b2
            ],
            out_specs=pl.BlockSpec((1, tb), lambda i: (i, 0)),   # lane-dense tile
        ),
        compiler_params=pltpu.CompilerParams(
            # Batch tiles are independent -> shard across both TCs on v7x.
            dimension_semantics=("parallel",),
        ),
        cost_estimate=cost,
    )(x.astype(jnp.float32), w1.astype(jnp.float32), params)

    # Rows >= B (last partial tile) are garbage and sliced off here.
    return out.reshape(-1)[:B].reshape(B, 1)


def init_params(key):
    """Deterministic init mimicking PyTorch's default Linear init:
    U(-1/sqrt(fan_in), 1/sqrt(fan_in)) for both weight and bias."""
    k1, k2, k3, k4 = jax.random.split(key, 4)
    bound1 = 1.0 / jnp.sqrt(100.0)
    bound2 = 1.0 / jnp.sqrt(10.0)
    # stored as (in_features, out_features) for x @ W
    w1 = jax.random.uniform(k1, (100, 10), jnp.float32, -bound1, bound1)
    b1 = jax.random.uniform(k2, (10,), jnp.float32, -bound1, bound1)
    w2 = jax.random.uniform(k3, (10, 1), jnp.float32, -bound2, bound2)
    b2 = jax.random.uniform(k4, (1,), jnp.float32, -bound2, bound2)
    return w1, b1, w2, b2


def _reference(x, w1, b1, w2, b2):
    h = jnp.dot(x, w1, precision=jax.lax.Precision.HIGHEST) + b1
    h = jnp.where(h >= 0.0, h, 0.01 * h)
    y = jnp.dot(h, w2, precision=jax.lax.Precision.HIGHEST) + b2
    return jax.nn.sigmoid(y)


if __name__ == "__main__":
    key = jax.random.PRNGKey(0)
    kx1, kx2, kp = jax.random.split(key, 3)
    w1, b1, w2, b2 = init_params(kp)

    # Small batch, not a multiple of 8 -> single tile, partial-block read path.
    B1 = 13
    x1 = jax.random.normal(kx1, (B1, 100), dtype=jnp.float32)
    out1 = jax.block_until_ready(domain_classifier_forward(x1, w1, b1, w2, b2))
    assert out1.shape == (B1, 1)
    assert jnp.allclose(out1, _reference(x1, w1, b1, w2, b2), atol=1e-5, rtol=1e-5)

    # Multi-tile grid with a partial final tile (explicit small tb for the test).
    B2 = 200
    x2 = jax.random.normal(kx2, (B2, 100), dtype=jnp.float32)
    out2 = jax.block_until_ready(
        domain_classifier_forward(x2, w1, b1, w2, b2, tb=64))
    assert out2.shape == (B2, 1)
    assert jnp.allclose(out2, _reference(x2, w1, b1, w2, b2), atol=1e-5, rtol=1e-5)

    print("KERNEL_OK")
</pallas_src>

<mosaic_0001>
module attributes {stable_mosaic.version = 11 : i64} {
  func.func @_domain_classifier_kernel(%arg0: i32, %arg1: memref<16x100xf32, #tpu.memory_space<vmem>>, %arg2: memref<100x10xf32, #tpu.memory_space<vmem>>, %arg3: memref<3x10xf32, #tpu.memory_space<vmem>>, %arg4: memref<1x16xf32, #tpu.memory_space<vmem>>) attributes {dimension_semantics = [#tpu.dimension_semantics<parallel>], iteration_bounds = array<i64: 1>, scalar_prefetch = 0 : i64, scratch_operands = 0 : i64, tpu.core_type = #tpu.core_type<tc>, window_params = [{transform_indices = @transform_0, window_bounds = array<i64: 16, 100>}, {pipeline_mode = #tpu.pipeline_mode<synchronous>, transform_indices = @transform_1, window_bounds = array<i64: 100, 10>}, {pipeline_mode = #tpu.pipeline_mode<synchronous>, transform_indices = @transform_2, window_bounds = array<i64: 3, 10>}, {transform_indices = @transform_3, window_bounds = array<i64: 1, 16>}]} {
    %c0 = arith.constant 0 : index
    %c0_0 = arith.constant 0 : index
    %0 = vector.load %arg1[%c0, %c0_0] : memref<16x100xf32, #tpu.memory_space<vmem>>, vector<16x100xf32>
    %c0_1 = arith.constant 0 : index
    %c0_2 = arith.constant 0 : index
    %1 = vector.load %arg2[%c0_1, %c0_2] : memref<100x10xf32, #tpu.memory_space<vmem>>, vector<100x10xf32>
    %c0_3 = arith.constant 0 : index
    %c0_4 = arith.constant 0 : index
    %2 = vector.load %arg3[%c0_3, %c0_4] : memref<3x10xf32, #tpu.memory_space<vmem>>, vector<1x10xf32>
    %c1 = arith.constant 1 : index
    %c0_5 = arith.constant 0 : index
    %3 = vector.load %arg3[%c1, %c0_5] : memref<3x10xf32, #tpu.memory_space<vmem>>, vector<1x10xf32>
    %c2 = arith.constant 2 : index
    %c0_6 = arith.constant 0 : index
    %4 = vector.load %arg3[%c2, %c0_6] : memref<3x10xf32, #tpu.memory_space<vmem>>, vector<1x1xf32>
    %cst = arith.constant dense<0.000000e+00> : vector<16x10xf32>
    %5 = tpu.matmul %0, %1, %cst {dimension_numbers = #tpu.dot_dimension_numbers<[1], [0], [0], [1], [0, 0, 1, 1], [], []>, precision = #tpu.contract_precision<fp32>} : vector<16x100xf32>, vector<100x10xf32>, vector<16x10xf32> -> vector<16x10xf32>
    %6 = vector.broadcast %2 : vector<1x10xf32> to vector<16x10xf32>
    %7 = arith.addf %5, %6 : vector<16x10xf32>
    %cst_7 = arith.constant 0.00999999977 : f32
    %8 = vector.broadcast %cst_7 : f32 to vector<16x10xf32>
    %9 = arith.mulf %8, %7 : vector<16x10xf32>
    %10 = arith.maximumf %7, %9 : vector<16x10xf32>
    %cst_8 = arith.constant dense<0.000000e+00> : vector<1x16xf32>
    %11 = tpu.matmul %3, %10, %cst_8 {dimension_numbers = #tpu.dot_dimension_numbers<[1], [1], [0], [0], [0, 0, 1, 0], [], []>, precision = #tpu.contract_precision<fp32>} : vector<1x10xf32>, vector<16x10xf32>, vector<1x16xf32> -> vector<1x16xf32>
    %12 = vector.broadcast %4 : vector<1x1xf32> to vector<1x16xf32>
    %13 = arith.addf %11, %12 : vector<1x16xf32>
    %14 = arith.negf %13 : vector<1x16xf32>
    %15 = math.exp %14 : vector<1x16xf32>
    %cst_9 = arith.constant 1.000000e+00 : f32
    %16 = vector.broadcast %cst_9 : f32 to vector<1x16xf32>
    %17 = arith.addf %16, %15 : vector<1x16xf32>
    %18 = arith.divf %16, %17 : vector<1x16xf32>
    %c0_10 = arith.constant 0 : index
    %c0_11 = arith.constant 0 : index
    %19 = vector.load %arg4[%c0_10, %c0_11] : memref<1x16xf32, #tpu.memory_space<vmem>>, vector<1x16xf32>
    tpu.vector_store %arg4[%c0_10, %c0_11], %18 {strides = array<i32>} : memref<1x16xf32, #tpu.memory_space<vmem>>, vector<1x16xf32>,
    return
  }
  func.func @transform_0(%arg0: i32) -> (i32, i32) {
    %c0_i32 = arith.constant 0 : i32
    %c0_i32_0 = arith.constant 0 : i32
    return %arg0, %c0_i32 : i32, i32
  }
  func.func @transform_1(%arg0: i32) -> (i32, i32) {
    %c0_i32 = arith.constant 0 : i32
    %c0_i32_0 = arith.constant 0 : i32
    %c0_i32_1 = arith.constant 0 : i32
    return %c0_i32, %c0_i32_0 : i32, i32
  }
  func.func @transform_2(%arg0: i32) -> (i32, i32) {
    %c0_i32 = arith.constant 0 : i32
    %c0_i32_0 = arith.constant 0 : i32
    %c0_i32_1 = arith.constant 0 : i32
    return %c0_i32, %c0_i32_0 : i32, i32
  }
  func.func @transform_3(%arg0: i32) -> (i32, i32) {
    %c0_i32 = arith.constant 0 : i32
    %c0_i32_0 = arith.constant 0 : i32
    return %arg0, %c0_i32 : i32, i32
  }
}

</mosaic_0001>

<llo_original>
// kernel: tpu_custom_call.1
$region0: #{tpu_custom_call.1}
  #allocation0 [shape = 'u32[]', space=smem, size = 0x4, offset = 0x4, fixed_abs, tag = 'smem constant byte address 0x4 - core index']
  #allocation1 [shape = 'u32[72,128]{1,0:T(1,128)}', space=vmem, size = 0x9000, scoped, tag = 'internal scratch']
  %s0 = inlined_call_operand.vmem [shape: f32[13,100], index: 0, kind: input, shape index: {}]
  %s1 = inlined_call_operand.vmem [shape: f32[100,10], index: 1, kind: input, shape index: {}]
  %s2 = inlined_call_operand.vmem [shape: f32[3,10], index: 2, kind: input, shape index: {}]
  %s3 = inlined_call_operand.hbm [shape: f32[1,16], index: 3, kind: output, shape index: {}]
  %s4 = sld [smem:[#allocation0]]
  $region22: #{tpu_custom_call.1} parent=0
    _
  %s6 = ssub.s32 1, %s4
  %s7 = scalar_select 0, %s6, %s4
  $region1: #{tpu_custom_call.1} parent=0
    #allocation2 [shape = 'u8[512]{0}', space=vmem, size = 0x400, scoped, tag = 'output window, operand 0, single buffered']
    #allocation3 [shape = 's32[1]{0}', space=sflag, size = 0x4, scoped, tag = 'scoped memory for tpu_custom_call.1']
    %8 = vsyncpa [#allocation3], 0
    // Predicated region
    $region2: #{tpu_custom_call.1} parent=1 // pred_check
      _
    $region3: #{tpu_custom_call.1} parent=1 // pred_check_branch
      %10 = sbr.rel (0) target = $region5
    $region4: #{tpu_custom_call.1} parent=1 // pred_region
      _
    $region5: #{tpu_custom_call.1} parent=1 // pred_fallthru
      _
    // Predicated region
    $region6: #{tpu_custom_call.1} parent=1 // pred_check
      _
    $region7: #{tpu_custom_call.1} parent=1 // pred_check_branch
      %12 = sbr.rel (0) target = $region9
    $region8: #{tpu_custom_call.1} parent=1 // pred_region
      _
    $region9: #{tpu_custom_call.1} parent=1 // pred_fallthru
      _
    // Predicated region
    $region10: #{tpu_custom_call.1} parent=1 // pred_check
      _
    $region11: #{tpu_custom_call.1} parent=1 // pred_check_branch
      %14 = sbr.rel (0) target = $region13
    $region12: #{tpu_custom_call.1} parent=1 // pred_region
      _
    $region13: #{tpu_custom_call.1} parent=1 // pred_fallthru
      _
    %v15 = vld [vmem:[%s0] sm:$0xff]
    %v16 = vld [vmem:[%s0 + $0x8] sm:$0xff]
    %v17 = vld [vmem:[%s1] sm:$0xff]
    %v18 = vld [vmem:[%s1 + $0x8] sm:$0xff]
    %v19 = vld [vmem:[%s1 + $0x10] sm:$0xff]
    %v20 = vld [vmem:[%s1 + $0x18] sm:$0xff]
    %v21 = vld [vmem:[%s1 + $0x20] sm:$0xff]
    %v22 = vld [vmem:[%s1 + $0x28] sm:$0xff]
    %v23 = vld [vmem:[%s1 + $0x30] sm:$0xff]
    %v24 = vld [vmem:[%s1 + $0x38] sm:$0xff]
    %v25 = vld [vmem:[%s1 + $0x40] sm:$0xff]
    %v26 = vld [vmem:[%s1 + $0x48] sm:$0xff]
    %v27 = vld [vmem:[%s1 + $0x50] sm:$0xff]
    %v28 = vld [vmem:[%s1 + $0x58] sm:$0xff]
    %v29 = vld [vmem:[%s1 + $0x60] sm:$0xf]
    %v30 = vld [vmem:[%s2] sm:$0x1]
    %v31 = vld [vmem:[%s2 + $0x1] sm:$0x1]
    %v32 = vld [vmem:[%s2 + $0x2] sm:$0x1]
    %v33 = vperm.slane %v30, 0
    %vm34 = vcmask 818176
    %v36 = vsel %vm34, %v15, 0
    %v39 = vsel %vm34, %v16, 0
    %vm41 = vcmask 1043456
    %v43 = vsel %vm41, %v29, 0
    %45 = vmatpush.msra.mxu0 0.0
    %46 = vmatpush.msra.mxu0 0.0
    %47 = vmatpush.msra.mxu0 0.0
    %v48 = vand.u32 %v43, 4294901760
    %49 = vmatpush.msra.mxu0 %v48
    %v50 = vand.u32 %v28, 4294901760
    %51 = vmatpush.msra.mxu0 %v50
    %v52 = vand.u32 %v27, 4294901760
    %53 = vmatpush.msra.mxu0 %v52
    %v54 = vand.u32 %v26, 4294901760
    %55 = vmatpush.msra.mxu0 %v54
    %v56 = vand.u32 %v25, 4294901760
    %57 = vmatpush.msra.mxu0 %v56
    %v58 = vand.u32 %v24, 4294901760
    %59 = vmatpush.msra.mxu0 %v58
    %v60 = vand.u32 %v23, 4294901760
    %61 = vmatpush.msra.mxu0 %v60
    %v62 = vand.u32 %v22, 4294901760
    %63 = vmatpush.msra.mxu0 %v62
    %v64 = vand.u32 %v21, 4294901760
    %65 = vmatpush.msra.mxu0 %v64
    %v66 = vand.u32 %v20, 4294901760
    %67 = vmatpush.msra.mxu0 %v66
    %v68 = vand.u32 %v19, 4294901760
    %69 = vmatpush.msra.mxu0 %v68
    %v70 = vand.u32 %v18, 4294901760
    %71 = vmatpush.msra.mxu0 %v70
    %v72 = vand.u32 %v17, 4294901760
    %73 = vmatpush.msra.mxu0 %v72
    %v74 = vand.u32 %v36, 4294901760
    %v75 = vsub.f32 %v36, %v74
    %v76 = vand.u32 %v75, 4294901760
    %v77 = vsub.f32 %v75, %v76
    %v78 = vand.u32 %v77, 4294901760
    %79 = vmatmul.f32.gmra.mxu0 %v78
    %v80 = vpop.f32.mrf.mxu0
    %v81 = vadd.f32 %v33, %v80
    %v82 = vand.u32 %v39, 4294901760
    %v83 = vsub.f32 %v39, %v82
    %v84 = vand.u32 %v83, 4294901760
    %v85 = vsub.f32 %v83, %v84
    %v86 = vand.u32 %v85, 4294901760
    %87 = vmatmul.f32.gmra.mxu0 %v86
    %v88 = vpop.f32.mrf.mxu0
    %v89 = vadd.f32 %v33, %v88
    %90 = vdwg.mxu0
    %91 = vmatpush.msra.mxu0 0.0
    %92 = vmatpush.msra.mxu0 0.0
    %93 = vmatpush.msra.mxu0 0.0
    %v94 = vand.u32 %v43, 4294901760
    %v95 = vsub.f32 %v43, %v94
    %v96 = vand.u32 %v95, 4294901760
    %v97 = vsub.f32 %v95, %v96
    %v98 = vand.u32 %v97, 4294901760
    %99 = vmatpush.msra.mxu0 %v98
    %v100 = vand.u32 %v28, 4294901760
    %v101 = vsub.f32 %v28, %v100
    %v102 = vand.u32 %v101, 4294901760
    %v103 = vsub.f32 %v101, %v102
    %v104 = vand.u32 %v103, 4294901760
    %105 = vmatpush.msra.mxu0 %v104
    %v106 = vand.u32 %v27, 4294901760
    %v107 = vsub.f32 %v27, %v106
    %v108 = vand.u32 %v107, 4294901760
    %v109 = vsub.f32 %v107, %v108
    %v110 = vand.u32 %v109, 4294901760
    %111 = vmatpush.msra.mxu0 %v110
    %v112 = vand.u32 %v26, 4294901760
    %v113 = vsub.f32 %v26, %v112
    %v114 = vand.u32 %v113, 4294901760
    %v115 = vsub.f32 %v113, %v114
    %v116 = vand.u32 %v115, 4294901760
    %117 = vmatpush.msra.mxu0 %v116
    %v118 = vand.u32 %v25, 4294901760
    %v119 = vsub.f32 %v25, %v118
    %v120 = vand.u32 %v119, 4294901760
    %v121 = vsub.f32 %v119, %v120
    %v122 = vand.u32 %v121, 4294901760
    %123 = vmatpush.msra.mxu0 %v122
    %v124 = vand.u32 %v24, 4294901760
    %v125 = vsub.f32 %v24, %v124
    %v126 = vand.u32 %v125, 4294901760
    %v127 = vsub.f32 %v125, %v126
    %v128 = vand.u32 %v127, 4294901760
    %129 = vmatpush.msra.mxu0 %v128
    %v130 = vand.u32 %v23, 4294901760
    %v131 = vsub.f32 %v23, %v130
    %v132 = vand.u32 %v131, 4294901760
    %v133 = vsub.f32 %v131, %v132
    %v134 = vand.u32 %v133, 4294901760
    %135 = vmatpush.msra.mxu0 %v134
    %v136 = vand.u32 %v22, 4294901760
    %v137 = vsub.f32 %v22, %v136
    %v138 = vand.u32 %v137, 4294901760
    %v139 = vsub.f32 %v137, %v138
    %v140 = vand.u32 %v139, 4294901760
    %141 = vmatpush.msra.mxu0 %v140
    %v142 = vand.u32 %v21, 4294901760
    %v143 = vsub.f32 %v21, %v142
    %v144 = vand.u32 %v143, 4294901760
    %v145 = vsub.f32 %v143, %v144
    %v146 = vand.u32 %v145, 4294901760
    %147 = vmatpush.msra.mxu0 %v146
    %v148 = vand.u32 %v20, 4294901760
    %v149 = vsub.f32 %v20, %v148
    %v150 = vand.u32 %v149, 4294901760
    %v151 = vsub.f32 %v149, %v150
    %v152 = vand.u32 %v151, 4294901760
    %153 = vmatpush.msra.mxu0 %v152
    %v154 = vand.u32 %v19, 4294901760
    %v155 = vsub.f32 %v19, %v154
    %v156 = vand.u32 %v155, 4294901760
    %v157 = vsub.f32 %v155, %v156
    %v158 = vand.u32 %v157, 4294901760
    %159 = vmatpush.msra.mxu0 %v158
    %v160 = vand.u32 %v18, 4294901760
    %v161 = vsub.f32 %v18, %v160
    %v162 = vand.u32 %v161, 4294901760
    %v163 = vsub.f32 %v161, %v162
    %v164 = vand.u32 %v163, 4294901760
    %165 = vmatpush.msra.mxu0 %v164
    %v166 = vand.u32 %v17, 4294901760
    %v167 = vsub.f32 %v17, %v166
    %v168 = vand.u32 %v167, 4294901760
    %v169 = vsub.f32 %v167, %v168
    %v170 = vand.u32 %v169, 4294901760
    %171 = vmatpush.msra.mxu0 %v170
    %v172 = vand.u32 %v36, 4294901760
    %173 = vmatmul.f32.gmra.mxu0 %v172
    %v174 = vpop.f32.mrf.mxu0
    %v175 = vadd.f32 %v81, %v174
    %v176 = vand.u32 %v39, 4294901760
    %177 = vmatmul.f32.gmra.mxu0 %v176
    %v178 = vpop.f32.mrf.mxu0
    %v179 = vadd.f32 %v89, %v178
    %180 = vdwg.mxu0
    %181 = vmatpush.msra.mxu0 0.0
    %182 = vmatpush.msra.mxu0 0.0
    %183 = vmatpush.msra.mxu0 0.0
    %v184 = vand.u32 %v43, 4294901760
    %v185 = vsub.f32 %v43, %v184
    %186 = vmatpush.msra.mxu0 %v185
    %v187 = vand.u32 %v28, 4294901760
    %v188 = vsub.f32 %v28, %v187
    %189 = vmatpush.msra.mxu0 %v188
    %v190 = vand.u32 %v27, 4294901760
    %v191 = vsub.f32 %v27, %v190
    %192 = vmatpush.msra.mxu0 %v191
    %v193 = vand.u32 %v26, 4294901760
    %v194 = vsub.f32 %v26, %v193
    %195 = vmatpush.msra.mxu0 %v194
    %v196 = vand.u32 %v25, 4294901760
    %v197 = vsub.f32 %v25, %v196
    %198 = vmatpush.msra.mxu0 %v197
    %v199 = vand.u32 %v24, 4294901760
    %v200 = vsub.f32 %v24, %v199
    %201 = vmatpush.msra.mxu0 %v200
    %v202 = vand.u32 %v23, 4294901760
    %v203 = vsub.f32 %v23, %v202
    %204 = vmatpush.msra.mxu0 %v203
    %v205 = vand.u32 %v22, 4294901760
    %v206 = vsub.f32 %v22, %v205
    %207 = vmatpush.msra.mxu0 %v206
    %v208 = vand.u32 %v21, 4294901760
    %v209 = vsub.f32 %v21, %v208
    %210 = vmatpush.msra.mxu0 %v209
    %v211 = vand.u32 %v20, 4294901760
    %v212 = vsub.f32 %v20, %v211
    %213 = vmatpush.msra.mxu0 %v212
    %v214 = vand.u32 %v19, 4294901760
    %v215 = vsub.f32 %v19, %v214
    %216 = vmatpush.msra.mxu0 %v215
    %v217 = vand.u32 %v18, 4294901760
    %v218 = vsub.f32 %v18, %v217
    %219 = vmatpush.msra.mxu0 %v218
    %v220 = vand.u32 %v17, 4294901760
    %v221 = vsub.f32 %v17, %v220
    %222 = vmatpush.msra.mxu0 %v221
    %v223 = vand.u32 %v36, 4294901760
    %v224 = vsub.f32 %v36, %v223
    %225 = vmatmul.f32.gmra.mxu0 %v224
    %v226 = vpop.f32.mrf.mxu0
    %v227 = vadd.f32 %v175, %v226
    %v228 = vand.u32 %v39, 4294901760
    %v229 = vsub.f32 %v39, %v228
    %230 = vmatmul.f32.gmra.mxu0 %v229
    %v231 = vpop.f32.mrf.mxu0
    %v232 = vadd.f32 %v179, %v231
    %233 = vdwg.mxu0
    %234 = vmatpush.msra.mxu0 0.0
    %235 = vmatpush.msra.mxu0 0.0
    %236 = vmatpush.msra.mxu0 0.0
    %v237 = vand.u32 %v43, 4294901760
    %238 = vmatpush.msra.mxu0 %v237
    %v239 = vand.u32 %v28, 4294901760
    %240 = vmatpush.msra.mxu0 %v239
    %v241 = vand.u32 %v27, 4294901760
    %242 = vmatpush.msra.mxu0 %v241
    %v243 = vand.u32 %v26, 4294901760
    %244 = vmatpush.msra.mxu0 %v243
    %v245 = vand.u32 %v25, 4294901760
    %246 = vmatpush.msra.mxu0 %v245
    %v247 = vand.u32 %v24, 4294901760
    %248 = vmatpush.msra.mxu0 %v247
    %v249 = vand.u32 %v23, 4294901760
    %250 = vmatpush.msra.mxu0 %v249
    %v251 = vand.u32 %v22, 4294901760
    %252 = vmatpush.msra.mxu0 %v251
    %v253 = vand.u32 %v21, 4294901760
    %254 = vmatpush.msra.mxu0 %v253
    %v255 = vand.u32 %v20, 4294901760
    %256 = vmatpush.msra.mxu0 %v255
    %v257 = vand.u32 %v19, 4294901760
    %258 = vmatpush.msra.mxu0 %v257
    %v259 = vand.u32 %v18, 4294901760
    %260 = vmatpush.msra.mxu0 %v259
    %v261 = vand.u32 %v17, 4294901760
    %262 = vmatpush.msra.mxu0 %v261
    %v263 = vand.u32 %v36, 4294901760
    %v264 = vsub.f32 %v36, %v263
    %v265 = vand.u32 %v264, 4294901760
    %266 = vmatmul.f32.gmra.mxu0 %v265
    %v267 = vpop.f32.mrf.mxu0
    %v268 = vadd.f32 %v227, %v267
    %v269 = vand.u32 %v39, 4294901760
    %v270 = vsub.f32 %v39, %v269
    %v271 = vand.u32 %v270, 4294901760
    %272 = vmatmul.f32.gmra.mxu0 %v271
    %v273 = vpop.f32.mrf.mxu0
    %v274 = vadd.f32 %v232, %v273
    %275 = vdwg.mxu0
    %276 = vmatpush.msra.mxu0 0.0
    %277 = vmatpush.msra.mxu0 0.0
    %278 = vmatpush.msra.mxu0 0.0
    %v279 = vand.u32 %v43, 4294901760
    %v280 = vsub.f32 %v43, %v279
    %v281 = vand.u32 %v280, 4294901760
    %282 = vmatpush.msra.mxu0 %v281
    %v283 = vand.u32 %v28, 4294901760
    %v284 = vsub.f32 %v28, %v283
    %v285 = vand.u32 %v284, 4294901760
    %286 = vmatpush.msra.mxu0 %v285
    %v287 = vand.u32 %v27, 4294901760
    %v288 = vsub.f32 %v27, %v287
    %v289 = vand.u32 %v288, 4294901760
    %290 = vmatpush.msra.mxu0 %v289
    %v291 = vand.u32 %v26, 4294901760
    %v292 = vsub.f32 %v26, %v291
    %v293 = vand.u32 %v292, 4294901760
    %294 = vmatpush.msra.mxu0 %v293
    %v295 = vand.u32 %v25, 4294901760
    %v296 = vsub.f32 %v25, %v295
    %v297 = vand.u32 %v296, 4294901760
    %298 = vmatpush.msra.mxu0 %v297
    %v299 = vand.u32 %v24, 4294901760
    %v300 = vsub.f32 %v24, %v299
    %v301 = vand.u32 %v300, 4294901760
    %302 = vmatpush.msra.mxu0 %v301
    %v303 = vand.u32 %v23, 4294901760
    %v304 = vsub.f32 %v23, %v303
    %v305 = vand.u32 %v304, 4294901760
    %306 = vmatpush.msra.mxu0 %v305
    %v307 = vand.u32 %v22, 4294901760
    %v308 = vsub.f32 %v22, %v307
    %v309 = vand.u32 %v308, 4294901760
    %310 = vmatpush.msra.mxu0 %v309
    %v311 = vand.u32 %v21, 4294901760
    %v312 = vsub.f32 %v21, %v311
    %v313 = vand.u32 %v312, 4294901760
    %314 = vmatpush.msra.mxu0 %v313
    %v315 = vand.u32 %v20, 4294901760
    %v316 = vsub.f32 %v20, %v315
    %v317 = vand.u32 %v316, 4294901760
    %318 = vmatpush.msra.mxu0 %v317
    %v319 = vand.u32 %v19, 4294901760
    %v320 = vsub.f32 %v19, %v319
    %v321 = vand.u32 %v320, 4294901760
    %322 = vmatpush.msra.mxu0 %v321
    %v323 = vand.u32 %v18, 4294901760
    %v324 = vsub.f32 %v18, %v323
    %v325 = vand.u32 %v324, 4294901760
    %326 = vmatpush.msra.mxu0 %v325
    %v327 = vand.u32 %v17, 4294901760
    %v328 = vsub.f32 %v17, %v327
    %v329 = vand.u32 %v328, 4294901760
    %330 = vmatpush.msra.mxu0 %v329
    %v331 = vand.u32 %v36, 4294901760
    %332 = vmatmul.f32.gmra.mxu0 %v331
    %v333 = vpop.f32.mrf.mxu0
    %v334 = vadd.f32 %v268, %v333
    %v335 = vand.u32 %v39, 4294901760
    %336 = vmatmul.f32.gmra.mxu0 %v335
    %v337 = vpop.f32.mrf.mxu0
    %v338 = vadd.f32 %v274, %v337
    %339 = vdwg.mxu0
    %340 = vmatpush.msra.mxu0 0.0
    %341 = vmatpush.msra.mxu0 0.0
    %342 = vmatpush.msra.mxu0 0.0
    %v343 = vand.u32 %v43, 4294901760
    %344 = vmatpush.msra.mxu0 %v343
    %v345 = vand.u32 %v28, 4294901760
    %346 = vmatpush.msra.mxu0 %v345
    %v347 = vand.u32 %v27, 4294901760
    %348 = vmatpush.msra.mxu0 %v347
    %v349 = vand.u32 %v26, 4294901760
    %350 = vmatpush.msra.mxu0 %v349
    %v351 = vand.u32 %v25, 4294901760
    %352 = vmatpush.msra.mxu0 %v351
    %v353 = vand.u32 %v24, 4294901760
    %354 = vmatpush.msra.mxu0 %v353
    %v355 = vand.u32 %v23, 4294901760
    %356 = vmatpush.msra.mxu0 %v355
    %v357 = vand.u32 %v22, 4294901760
    %358 = vmatpush.msra.mxu0 %v357
    %v359 = vand.u32 %v21, 4294901760
    %360 = vmatpush.msra.mxu0 %v359
    %v361 = vand.u32 %v20, 4294901760
    %362 = vmatpush.msra.mxu0 %v361
    %v363 = vand.u32 %v19, 4294901760
    %364 = vmatpush.msra.mxu0 %v363
    %v365 = vand.u32 %v18, 4294901760
    %366 = vmatpush.msra.mxu0 %v365
    %v367 = vand.u32 %v17, 4294901760
    %368 = vmatpush.msra.mxu0 %v367
    %v369 = vand.u32 %v36, 4294901760
    %370 = vmatmul.f32.gmra.mxu0 %v369
    %v371 = vpop.f32.mrf.mxu0
    %v372 = vadd.f32 %v334, %v371
    %v373 = vand.u32 %v39, 4294901760
    %374 = vmatmul.f32.gmra.mxu0 %v373
    %v375 = vpop.f32.mrf.mxu0
    %v376 = vadd.f32 %v338, %v375
    %377 = vdwg.mxu0
    %v378 = vmul.f32 %v372, 0.01
    %v379 = vmul.f32 %v376, 0.01
    %v380 = vmax.f32 %v372, %v378
    %v381 = vmax.f32 %v376, %v379
    %383 = vset.pattern.permute.xlu0 0
    %384 = vperm.xlu0 %383, %v32
    %v385 = vpop.permute.xlu0 %384
    %vm387 = vcmask 80896
    %v389 = vsel %vm387, %v31, 0
    %v392 = vsel %vm387, %v380, 0
    %v395 = vsel %vm387, %v381, 0
    %397 = vmatpush.xpose.msra.mxu0 0.0
    %398 = vmatpush.xpose.msra.mxu0 0.0
    %399 = vmatpush.xpose.msra.mxu0 0.0
    %400 = vmatpush.xpose.msra.mxu0 0.0
    %401 = vmatpush.xpose.msra.mxu0 0.0
    %402 = vmatpush.xpose.msra.mxu0 0.0
    %403 = vmatpush.xpose.msra.mxu0 0.0
    %404 = vmatpush.xpose.msra.mxu0 0.0
    %405 = vmatpush.xpose.msra.mxu0 0.0
    %406 = vmatpush.xpose.msra.mxu0 0.0
    %407 = vmatpush.xpose.msra.mxu0 0.0
    %408 = vmatpush.xpose.msra.mxu0 0.0
    %409 = vmatpush.xpose.msra.mxu0 0.0
    %410 = vmatpush.xpose.msra.mxu0 0.0
    %v411 = vand.u32 %v395, 4294901760
    %412 = vmatpush.xpose.msra.mxu0 %v411
    %v413 = vand.u32 %v392, 4294901760
    %414 = vmatpush.xpose.msra.mxu0 %v413
    %v415 = vand.u32 %v389, 4294901760
    %v416 = vsub.f32 %v389, %v415
    %v417 = vand.u32 %v416, 4294901760
    %v418 = vsub.f32 %v416, %v417
    %v419 = vand.u32 %v418, 4294901760
    %420 = vmatmul.f32.gmra.mxu0 %v419
    %v421 = vpop.f32.mrf.mxu0
    %v422 = vadd.f32 %v385, %v421
    %423 = vdwg.mxu0
    %424 = vmatpush.xpose.msra.mxu0 0.0
    %425 = vmatpush.xpose.msra.mxu0 0.0
    %426 = vmatpush.xpose.msra.mxu0 0.0
    %427 = vmatpush.xpose.msra.mxu0 0.0
    %428 = vmatpush.xpose.msra.mxu0 0.0
    %429 = vmatpush.xpose.msra.mxu0 0.0
    %430 = vmatpush.xpose.msra.mxu0 0.0
    %431 = vmatpush.xpose.msra.mxu0 0.0
    %432 = vmatpush.xpose.msra.mxu0 0.0
    %433 = vmatpush.xpose.msra.mxu0 0.0
    %434 = vmatpush.xpose.msra.mxu0 0.0
    %435 = vmatpush.xpose.msra.mxu0 0.0
    %436 = vmatpush.xpose.msra.mxu0 0.0
    %437 = vmatpush.xpose.msra.mxu0 0.0
    %v438 = vand.u32 %v395, 4294901760
    %v439 = vsub.f32 %v395, %v438
    %v440 = vand.u32 %v439, 4294901760
    %v441 = vsub.f32 %v439, %v440
    %v442 = vand.u32 %v441, 4294901760
    %443 = vmatpush.xpose.msra.mxu0 %v442
    %v444 = vand.u32 %v392, 4294901760
    %v445 = vsub.f32 %v392, %v444
    %v446 = vand.u32 %v445, 4294901760
    %v447 = vsub.f32 %v445, %v446
    %v448 = vand.u32 %v447, 4294901760
    %449 = vmatpush.xpose.msra.mxu0 %v448
    %v450 = vand.u32 %v389, 4294901760
    %451 = vmatmul.f32.gmra.mxu0 %v450
    %v452 = vpop.f32.mrf.mxu0
    %v453 = vadd.f32 %v422, %v452
    %454 = vdwg.mxu0
    %455 = vmatpush.xpose.msra.mxu0 0.0
    %456 = vmatpush.xpose.msra.mxu0 0.0
    %457 = vmatpush.xpose.msra.mxu0 0.0
    %458 = vmatpush.xpose.msra.mxu0 0.0
    %459 = vmatpush.xpose.msra.mxu0 0.0
    %460 = vmatpush.xpose.msra.mxu0 0.0
    %461 = vmatpush.xpose.msra.mxu0 0.0
    %462 = vmatpush.xpose.msra.mxu0 0.0
    %463 = vmatpush.xpose.msra.mxu0 0.0
    %464 = vmatpush.xpose.msra.mxu0 0.0
    %465 = vmatpush.xpose.msra.mxu0 0.0
    %466 = vmatpush.xpose.msra.mxu0 0.0
    %467 = vmatpush.xpose.msra.mxu0 0.0
    %468 = vmatpush.xpose.msra.mxu0 0.0
    %v469 = vand.u32 %v395, 4294901760
    %v470 = vsub.f32 %v395, %v469
    %471 = vmatpush.xpose.msra.mxu0 %v470
    %v472 = vand.u32 %v392, 4294901760
    %v473 = vsub.f32 %v392, %v472
    %474 = vmatpush.xpose.msra.mxu0 %v473
    %v475 = vand.u32 %v389, 4294901760
    %v476 = vsub.f32 %v389, %v475
    %477 = vmatmul.f32.gmra.mxu0 %v476
    %v478 = vpop.f32.mrf.mxu0
    %v479 = vadd.f32 %v453, %v478
    %480 = vdwg.mxu0
    %481 = vmatpush.xpose.msra.mxu0 0.0
    %482 = vmatpush.xpose.msra.mxu0 0.0
    %483 = vmatpush.xpose.msra.mxu0 0.0
    %484 = vmatpush.xpose.msra.mxu0 0.0
    %485 = vmatpush.xpose.msra.mxu0 0.0
    %486 = vmatpush.xpose.msra.mxu0 0.0
    %487 = vmatpush.xpose.msra.mxu0 0.0
    %488 = vmatpush.xpose.msra.mxu0 0.0
    %489 = vmatpush.xpose.msra.mxu0 0.0
    %490 = vmatpush.xpose.msra.mxu0 0.0
    %491 = vmatpush.xpose.msra.mxu0 0.0
    %492 = vmatpush.xpose.msra.mxu0 0.0
    %493 = vmatpush.xpose.msra.mxu0 0.0
    %494 = vmatpush.xpose.msra.mxu0 0.0
    %v495 = vand.u32 %v395, 4294901760
    %496 = vmatpush.xpose.msra.mxu0 %v495
    %v497 = vand.u32 %v392, 4294901760
    %498 = vmatpush.xpose.msra.mxu0 %v497
    %v499 = vand.u32 %v389, 4294901760
    %v500 = vsub.f32 %v389, %v499
    %v501 = vand.u32 %v500, 4294901760
    %502 = vmatmul.f32.gmra.mxu0 %v501
    %v503 = vpop.f32.mrf.mxu0
    %v504 = vadd.f32 %v479, %v503
    %505 = vdwg.mxu0
    %506 = vmatpush.xpose.msra.mxu0 0.0
    %507 = vmatpush.xpose.msra.mxu0 0.0
    %508 = vmatpush.xpose.msra.mxu0 0.0
    %509 = vmatpush.xpose.msra.mxu0 0.0
    %510 = vmatpush.xpose.msra.mxu0 0.0
    %511 = vmatpush.xpose.msra.mxu0 0.0
    %512 = vmatpush.xpose.msra.mxu0 0.0
    %513 = vmatpush.xpose.msra.mxu0 0.0
    %514 = vmatpush.xpose.msra.mxu0 0.0
    %515 = vmatpush.xpose.msra.mxu0 0.0
    %516 = vmatpush.xpose.msra.mxu0 0.0
    %517 = vmatpush.xpose.msra.mxu0 0.0
    %518 = vmatpush.xpose.msra.mxu0 0.0
    %519 = vmatpush.xpose.msra.mxu0 0.0
    %v520 = vand.u32 %v395, 4294901760
    %v521 = vsub.f32 %v395, %v520
    %v522 = vand.u32 %v521, 4294901760
    %523 = vmatpush.xpose.msra.mxu0 %v522
    %v524 = vand.u32 %v392, 4294901760
    %v525 = vsub.f32 %v392, %v524
    %v526 = vand.u32 %v525, 4294901760
    %527 = vmatpush.xpose.msra.mxu0 %v526
    %v528 = vand.u32 %v389, 4294901760
    %529 = vmatmul.f32.gmra.mxu0 %v528
    %v530 = vpop.f32.mrf.mxu0
    %v531 = vadd.f32 %v504, %v530
    %532 = vdwg.mxu0
    %533 = vmatpush.xpose.msra.mxu0 0.0
    %534 = vmatpush.xpose.msra.mxu0 0.0
    %535 = vmatpush.xpose.msra.mxu0 0.0
    %536 = vmatpush.xpose.msra.mxu0 0.0
    %537 = vmatpush.xpose.msra.mxu0 0.0
    %538 = vmatpush.xpose.msra.mxu0 0.0
    %539 = vmatpush.xpose.msra.mxu0 0.0
    %540 = vmatpush.xpose.msra.mxu0 0.0
    %541 = vmatpush.xpose.msra.mxu0 0.0
    %542 = vmatpush.xpose.msra.mxu0 0.0
    %543 = vmatpush.xpose.msra.mxu0 0.0
    %544 = vmatpush.xpose.msra.mxu0 0.0
    %545 = vmatpush.xpose.msra.mxu0 0.0
    %546 = vmatpush.xpose.msra.mxu0 0.0
    %v547 = vand.u32 %v395, 4294901760
    %548 = vmatpush.xpose.msra.mxu0 %v547
    %v549 = vand.u32 %v392, 4294901760
    %550 = vmatpush.xpose.msra.mxu0 %v549
    %v551 = vand.u32 %v389, 4294901760
    %552 = vmatmul.f32.gmra.mxu0 %v551
    %v553 = vpop.f32.mrf.mxu0
    %v554 = vadd.f32 %v531, %v553
    %555 = vdwg.mxu0
    %v556 = vxor.u32 %v554, 2147483648
    %v557 = vmul.f32 %v556, 1.442695
    %v558 = vpow.pop %v557
    %v559 = vadd.f32 %v558, 1.0
    %v560 = vrcp.pop %v559
    %v561 = vmul.f32 %v559, %v560
    %v562 = vsub.f32 1.0, %v561
    %v563 = vmul.f32 %v560, %v562
    %v564 = vadd.f32 %v560, %v563
    %vm565 = vweird.f32 %v559
    %vm566 = vweird.f32 %v560
    %vm567 = vmor %vm565, %vm566
    %v568 = vsel %vm567, %v560, %v564
    %v569 = vand.u32 2147483647, %v559
    %vm570 = vcmp.eq.f32.partialorder %v569, 8.507059e+37
    %v571 = vand.u32 %v559, 2147483648
    %v572 = vor.u32 1.1754944e-38, %v571
    %v573 = vsel %vm570, %v572, %v568
    %v574 = vmul.f32 1.0, %v573
    %vm575 = vcmask 122880
    %576 = vst.msk [vmem:[#allocation2] sm:$0x1] %vm575, %v574
    // Predicated region
    $region14: #{tpu_custom_call.1} parent=1 // pred_check
      _
    $region15: #{tpu_custom_call.1} parent=1 // pred_check_branch
      %578 = sbr.rel (0) target = $region17
    $region16: #{tpu_custom_call.1} parent=1 // pred_region
      %580 = vsyncadd [#allocation3], 0
      %s582 = sshll.u32 [#allocation2], 4
      %s583 = int_to_ptr.vmem [resolvable:$true] %s582
      %s584 = sshll.u32 %s3, 4
      %s585 = int_to_ptr.hbm [resolvable:$true] %s584
      %587 = dma.vmem_to_hbm [thread:$0]  %s583, 16, %s585, [#allocation3]
    $region17: #{tpu_custom_call.1} parent=1 // pred_fallthru
      _
    // Predicated region
    $region18: #{tpu_custom_call.1} parent=1 // pred_check
      _
    $region19: #{tpu_custom_call.1} parent=1 // pred_check_branch
      %589 = sbr.rel (0) target = $region21
    $region20: #{tpu_custom_call.1} parent=1 // pred_region
      %591 = dma.done [#allocation3], 16
    $region21: #{tpu_custom_call.1} parent=1 // pred_fallthru
      _
    %592 = vsyncpa [#allocation3], 1

</llo_original>
